<compile_context>
chip_gen: v7x
topology: tpu7x:2x2x1
jax: 0.10.0
libtpu: 0.0.40
codegen_flags: <defaults>
</compile_context>

<pallas_src>
import functools

import jax
import jax.numpy as jnp
from jax import lax
from jax.experimental import pallas as pl
from jax.experimental.pallas import tpu as pltpu


_QROWS = 8  # sublane rows used for the lane-major q slab (divisibility by 8)


# ----------------------------- Pallas kernel --------------------------------

def _fused_dqn_kernel(s_ref, a_ref, ws_ref, wa_ref, bs_ref, ba_ref,
                      s_out_ref, a_out_ref, q_ref):
    """Fused encoders + combine for one batch tile.

    s:  (tb, Ds)      state tile
    a:  (tb, Da)      action tile
    ws: (Ds, H), wa: (Da, H), bs/ba: (1, H)
    s_out / a_out: (tb, H)    relu(x @ W + b)
    q:  (8, tb)       lane-major Q slab (row 0 holds the values)
    """
    w_dtype = ws_ref.dtype                      # bf16 path: cast inside kernel
    s = s_ref[...].astype(w_dtype)
    a = a_ref[...].astype(w_dtype)

    s_emb = jnp.dot(s, ws_ref[...], preferred_element_type=jnp.float32)
    a_emb = jnp.dot(a, wa_ref[...], preferred_element_type=jnp.float32)
    s_emb = jnp.maximum(s_emb + bs_ref[...], 0.0)
    a_emb = jnp.maximum(a_emb + ba_ref[...], 0.0)

    s_out_ref[...] = s_emb.astype(s_out_ref.dtype)
    a_out_ref[...] = a_emb.astype(a_out_ref.dtype)

    # Per-row dot product, emitted lane-major: contract H with a ones matrix on
    # the MXU -> (8, tb); row 0 carries q for every row of the tile.
    p = s_emb * a_emb                                      # (tb, H) f32
    ones = jnp.ones((q_ref.shape[0], p.shape[-1]), jnp.float32)
    q = lax.dot_general(ones, p, (((1,), (1,)), ((), ())),
                        preferred_element_type=jnp.float32)  # (8, tb)
    q_ref[...] = q.astype(q_ref.dtype)


# ------------------------------ wrappers -------------------------------------

def _fused_call_single(state, action, ws, wa, bs, ba):
    """Whole problem fits one tile: no grid, no pipelining machinery."""
    batch = state.shape[0]
    h = ws.shape[1]
    vmem = pl.BlockSpec(memory_space=pltpu.MemorySpace.VMEM)
    return pl.pallas_call(
        _fused_dqn_kernel,
        out_shape=(jax.ShapeDtypeStruct((batch, h), jnp.float32),
                   jax.ShapeDtypeStruct((batch, h), jnp.float32),
                   jax.ShapeDtypeStruct((_QROWS, batch), jnp.float32)),
        in_specs=[vmem] * 6,
        out_specs=(vmem, vmem, vmem),
    )(state, action, ws, wa, bs, ba)


def _fused_call_tiled(state, action, ws, wa, bs, ba, tb, n_tiles):
    """Batch tiled at `tb`; weights/bias resident across tiles."""
    batch_p, ds = state.shape
    da = action.shape[1]
    h = ws.shape[1]
    return pl.pallas_call(
        _fused_dqn_kernel,
        out_shape=(jax.ShapeDtypeStruct((batch_p, h), jnp.float32),
                   jax.ShapeDtypeStruct((batch_p, h), jnp.float32),
                   jax.ShapeDtypeStruct((n_tiles * _QROWS, tb), jnp.float32)),
        grid=(n_tiles,),
        in_specs=[
            pl.BlockSpec((tb, ds), lambda i: (i, 0)),
            pl.BlockSpec((tb, da), lambda i: (i, 0)),
            pl.BlockSpec((ds, h), lambda i: (0, 0)),
            pl.BlockSpec((da, h), lambda i: (0, 0)),
            pl.BlockSpec((1, h), lambda i: (0, 0)),
            pl.BlockSpec((1, h), lambda i: (0, 0)),
        ],
        out_specs=(
            pl.BlockSpec((tb, h), lambda i: (i, 0)),
            pl.BlockSpec((tb, h), lambda i: (i, 0)),
            pl.BlockSpec((_QROWS, tb), lambda i: (i, 0)),
        ),
        compiler_params=pltpu.CompilerParams(
            dimension_semantics=("parallel",),
            vmem_limit_bytes=32 * 1024 * 1024),
    )(state, action, ws, wa, bs, ba)


def _choose_tile(batch, tile_b):
    """Multiple of 128 rows; keep >=2 tiles for batch>=256 (v7x megacore)."""
    half = (batch // 2) // 128 * 128
    return max(128, min(tile_b, max(128, half)))


@functools.partial(jax.jit, static_argnames=("tile_b",))
def fused_forward(state, action, ws, wa, bs, ba, *, tile_b=512):
    """Returns (q (B,1), s_emb (B,H), a_emb (B,H))."""
    batch = state.shape[0]

    if batch <= 128:
        s_emb, a_emb, q8 = _fused_call_single(state, action, ws, wa, bs, ba)
        return q8[0, :].reshape(batch, 1), s_emb, a_emb

    tb = _choose_tile(batch, tile_b)
    n_tiles = -(-batch // tb)
    batch_p = n_tiles * tb
    if batch_p != batch:
        pad = batch_p - batch
        state = jnp.pad(state, ((0, pad), (0, 0)))
        action = jnp.pad(action, ((0, pad), (0, 0)))

    s_emb, a_emb, q_rows = _fused_call_tiled(state, action, ws, wa, bs, ba,
                                             tb, n_tiles)
    q = q_rows.reshape(n_tiles, _QROWS, tb)[:, 0, :].reshape(batch_p)
    return q[:batch].reshape(batch, 1), s_emb[:batch], a_emb[:batch]


class PallasDQNModel:
    """JAX/Pallas equivalent of Model(state_encoder, action_encoder)."""

    def __init__(self, state_dim, action_dim, hidden, key,
                 use_bf16=False, tile_b=512):
        ks, ka = jax.random.split(key)
        k1, k2 = jax.random.split(ks)
        k3, k4 = jax.random.split(ka)
        scale_s = 1.0 / jnp.sqrt(state_dim)
        scale_a = 1.0 / jnp.sqrt(action_dim)
        # state_encoder params (f32 masters, used by the reference too)
        self.Ws = jax.random.uniform(k1, (state_dim, hidden), jnp.float32,
                                     -scale_s, scale_s)
        self.bs = jax.random.uniform(k2, (hidden,), jnp.float32,
                                     -scale_s, scale_s)
        # action_encoder params
        self.Wa = jax.random.uniform(k3, (action_dim, hidden), jnp.float32,
                                     -scale_a, scale_a)
        self.ba = jax.random.uniform(k4, (hidden,), jnp.float32,
                                     -scale_a, scale_a)
        # Kernel-side params: weights pre-cast ONCE (bf16 path), biases as (1,H).
        kdt = jnp.bfloat16 if use_bf16 else jnp.float32
        self._Ws_k = self.Ws.astype(kdt)
        self._Wa_k = self.Wa.astype(kdt)
        self._bs2d = self.bs.reshape(1, hidden)
        self._ba2d = self.ba.reshape(1, hidden)

        self.state_dim = state_dim
        self.action_dim = action_dim
        self.hidden = hidden
        self.tile_b = tile_b
        self.use_bf16 = use_bf16
        self.training = False

    def train(self, boolean):
        # mirrors Model.train: just flips the flag on both encoders
        self.training = boolean

    def __call__(self, state, action):
        return fused_forward(state, action, self._Ws_k, self._Wa_k,
                             self._bs2d, self._ba2d, tile_b=self.tile_b)


# ------------------------------- reference ----------------------------------

def reference(state, action, model):
    s = jnp.maximum(state @ model.Ws + model.bs, 0.0)
    a = jnp.maximum(action @ model.Wa + model.ba, 0.0)
    return jnp.sum(s * a, axis=-1, keepdims=True), s, a


# --------------------------------- main --------------------------------------

if __name__ == "__main__":
    key = jax.random.PRNGKey(0)
    k_param, k_state, k_action = jax.random.split(key, 3)

    batch, state_dim, action_dim, hidden = 8, 16, 4, 32

    model = PallasDQNModel(state_dim, action_dim, hidden, k_param)
    model.train(False)

    # --- small batch: single-shot (no grid) path ---
    state = jax.random.normal(k_state, (batch, state_dim), jnp.float32)
    action = jax.random.normal(k_action, (batch, action_dim), jnp.float32)

    q, s_emb, a_emb = model(state, action)
    jax.block_until_ready((q, s_emb, a_emb))

    q_ref, s_ref, a_ref = reference(state, action, model)
    assert q.shape == (batch, 1)
    assert jnp.allclose(q, q_ref, atol=1e-4, rtol=1e-4)
    assert jnp.allclose(s_emb, s_ref, atol=1e-5, rtol=1e-5)
    assert jnp.allclose(a_emb, a_ref, atol=1e-5, rtol=1e-5)

    # --- larger (ragged) batch: tiled "parallel" grid path with padding ---
    big_b = 200
    kbs, kba = jax.random.split(jax.random.PRNGKey(1))
    big_state = jax.random.normal(kbs, (big_b, state_dim), jnp.float32)
    big_action = jax.random.normal(kba, (big_b, action_dim), jnp.float32)

    q2, s2, a2 = model(big_state, big_action)
    jax.block_until_ready((q2, s2, a2))

    q2_ref, s2_ref, a2_ref = reference(big_state, big_action, model)
    assert q2.shape == (big_b, 1)
    assert jnp.allclose(q2, q2_ref, atol=1e-4, rtol=1e-4)
    assert jnp.allclose(s2, s2_ref, atol=1e-5, rtol=1e-5)
    assert jnp.allclose(a2, a2_ref, atol=1e-5, rtol=1e-5)

    print("KERNEL_OK")
</pallas_src>

<mosaic_0001>
module attributes {stable_mosaic.version = 11 : i64} {
  func.func @_fused_dqn_kernel(%arg0: memref<8x16xf32, #tpu.memory_space<vmem>>, %arg1: memref<8x4xf32, #tpu.memory_space<vmem>>, %arg2: memref<16x32xf32, #tpu.memory_space<vmem>>, %arg3: memref<4x32xf32, #tpu.memory_space<vmem>>, %arg4: memref<1x32xf32, #tpu.memory_space<vmem>>, %arg5: memref<1x32xf32, #tpu.memory_space<vmem>>, %arg6: memref<8x32xf32, #tpu.memory_space<vmem>>, %arg7: memref<8x32xf32, #tpu.memory_space<vmem>>, %arg8: memref<8x8xf32, #tpu.memory_space<vmem>>) attributes {dimension_semantics = [], scalar_prefetch = 0 : i64, scratch_operands = 0 : i64, tpu.core_type = #tpu.core_type<tc>} {
    %c0 = arith.constant 0 : index
    %c0_0 = arith.constant 0 : index
    %0 = vector.load %arg0[%c0, %c0_0] : memref<8x16xf32, #tpu.memory_space<vmem>>, vector<8x16xf32>
    %c0_1 = arith.constant 0 : index
    %c0_2 = arith.constant 0 : index
    %1 = vector.load %arg1[%c0_1, %c0_2] : memref<8x4xf32, #tpu.memory_space<vmem>>, vector<8x4xf32>
    %c0_3 = arith.constant 0 : index
    %c0_4 = arith.constant 0 : index
    %2 = vector.load %arg2[%c0_3, %c0_4] : memref<16x32xf32, #tpu.memory_space<vmem>>, vector<16x32xf32>
    %cst = arith.constant dense<0.000000e+00> : vector<8x32xf32>
    %3 = tpu.matmul %0, %2, %cst {dimension_numbers = #tpu.dot_dimension_numbers<[1], [0], [0], [1], [0, 0, 1, 1], [], []>} : vector<8x16xf32>, vector<16x32xf32>, vector<8x32xf32> -> vector<8x32xf32>
    %c0_5 = arith.constant 0 : index
    %c0_6 = arith.constant 0 : index
    %4 = vector.load %arg3[%c0_5, %c0_6] : memref<4x32xf32, #tpu.memory_space<vmem>>, vector<4x32xf32>
    %cst_7 = arith.constant dense<0.000000e+00> : vector<8x32xf32>
    %5 = tpu.matmul %1, %4, %cst_7 {dimension_numbers = #tpu.dot_dimension_numbers<[1], [0], [0], [1], [0, 0, 1, 1], [], []>} : vector<8x4xf32>, vector<4x32xf32>, vector<8x32xf32> -> vector<8x32xf32>
    %c0_8 = arith.constant 0 : index
    %c0_9 = arith.constant 0 : index
    %6 = vector.load %arg4[%c0_8, %c0_9] : memref<1x32xf32, #tpu.memory_space<vmem>>, vector<1x32xf32>
    %7 = vector.broadcast %6 : vector<1x32xf32> to vector<8x32xf32>
    %8 = arith.addf %3, %7 : vector<8x32xf32>
    %cst_10 = arith.constant 0.000000e+00 : f32
    %9 = vector.broadcast %cst_10 : f32 to vector<8x32xf32>
    %10 = arith.maximumf %8, %9 : vector<8x32xf32>
    %c0_11 = arith.constant 0 : index
    %c0_12 = arith.constant 0 : index
    %11 = vector.load %arg5[%c0_11, %c0_12] : memref<1x32xf32, #tpu.memory_space<vmem>>, vector<1x32xf32>
    %12 = vector.broadcast %11 : vector<1x32xf32> to vector<8x32xf32>
    %13 = arith.addf %5, %12 : vector<8x32xf32>
    %cst_13 = arith.constant 0.000000e+00 : f32
    %14 = vector.broadcast %cst_13 : f32 to vector<8x32xf32>
    %15 = arith.maximumf %13, %14 : vector<8x32xf32>
    %c0_14 = arith.constant 0 : index
    %c0_15 = arith.constant 0 : index
    %16 = vector.load %arg6[%c0_14, %c0_15] : memref<8x32xf32, #tpu.memory_space<vmem>>, vector<8x32xf32>
    tpu.vector_store %arg6[%c0_14, %c0_15], %10 {strides = array<i32>} : memref<8x32xf32, #tpu.memory_space<vmem>>, vector<8x32xf32>,
    %c0_16 = arith.constant 0 : index
    %c0_17 = arith.constant 0 : index
    %17 = vector.load %arg7[%c0_16, %c0_17] : memref<8x32xf32, #tpu.memory_space<vmem>>, vector<8x32xf32>
    tpu.vector_store %arg7[%c0_16, %c0_17], %15 {strides = array<i32>} : memref<8x32xf32, #tpu.memory_space<vmem>>, vector<8x32xf32>,
    %18 = arith.mulf %10, %15 : vector<8x32xf32>
    %cst_18 = arith.constant 1.000000e+00 : f32
    %19 = vector.broadcast %cst_18 : f32 to vector<8x32xf32>
    %cst_19 = arith.constant dense<0.000000e+00> : vector<8x8xf32>
    %20 = tpu.matmul %19, %18, %cst_19 {dimension_numbers = #tpu.dot_dimension_numbers<[1], [1], [0], [0], [0, 0, 1, 0], [], []>} : vector<8x32xf32>, vector<8x32xf32>, vector<8x8xf32> -> vector<8x8xf32>
    %c0_20 = arith.constant 0 : index
    %c0_21 = arith.constant 0 : index
    %21 = vector.load %arg8[%c0_20, %c0_21] : memref<8x8xf32, #tpu.memory_space<vmem>>, vector<8x8xf32>
    tpu.vector_store %arg8[%c0_20, %c0_21], %20 {strides = array<i32>} : memref<8x8xf32, #tpu.memory_space<vmem>>, vector<8x8xf32>,
    return
  }
}

</mosaic_0001>

<llo_original>
// kernel: fused_forward.1
$region0: #{fused_forward.1}
  #allocation0 [shape = 'u32[]', space=smem, size = 0x4, offset = 0x4, fixed_abs, tag = 'smem constant byte address 0x4 - core index']
  #allocation1 [shape = 'u32[144,128]{1,0:T(1,128)}', space=vmem, size = 0x12000, scoped, tag = 'internal scratch']
  %s0 = inlined_call_operand.hbm [shape: f32[8,16], index: 0, kind: input, shape index: {}]
  %s1 = inlined_call_operand.vmem [shape: f32[8,4], index: 1, kind: input, shape index: {}]
  %s2 = inlined_call_operand.vmem [shape: f32[16,32], index: 2, kind: input, shape index: {}]
  %s3 = inlined_call_operand.vmem [shape: f32[4,32], index: 3, kind: input, shape index: {}]
  %s4 = inlined_call_operand.vmem [shape: f32[1,32], index: 4, kind: input, shape index: {}]
  %s5 = inlined_call_operand.vmem [shape: f32[1,32], index: 5, kind: input, shape index: {}]
  %s6 = inlined_call_operand.hbm [shape: f32[8,32], index: 6, kind: output, shape index: {0}]
  %s7 = inlined_call_operand.hbm [shape: f32[8,32], index: 7, kind: output, shape index: {1}]
  %s8 = inlined_call_operand.vmem [shape: f32[8,8], index: 8, kind: output, shape index: {2}]
  %9 = xla_tuple %s6, %s7, %s8
  %s10 = sld [smem:[#allocation0]]
  $region54: #{fused_forward.1} parent=0
    _
  %s12 = ssub.s32 1, %s10
  %s13 = scalar_select 0, %s12, %s10
  $region1: #{fused_forward.1} parent=0
    #allocation2 [shape = 'u8[4096]{0}', space=vmem, size = 0x1000, scoped, tag = 'input window, operand 0, single buffered']
    #allocation3 [shape = 's32[1]{0}', space=sflag, size = 0x4, scoped, tag = 'scoped memory for fused_forward.1']
    #allocation4 [shape = 's32[1]{0}', space=sflag, size = 0x4, scoped, tag = 'scoped memory for fused_forward.1']
    #allocation5 [shape = 'u8[4096]{0}', space=vmem, size = 0x1000, scoped, tag = 'output window, operand 0, single buffered']
    #allocation6 [shape = 'u8[4096]{0}', space=vmem, size = 0x1000, scoped, tag = 'output window, operand 1, single buffered']
    #allocation7 [shape = 's32[1]{0}', space=sflag, size = 0x4, scoped, tag = 'scoped memory for fused_forward.1']
    %14 = vsyncpa [#allocation3], 0
    %15 = vsyncpa [#allocation4], 0
    %16 = vsyncpa [#allocation7], 0
    // Predicated region
    $region2: #{fused_forward.1} parent=1 // pred_check
      _
    $region3: #{fused_forward.1} parent=1 // pred_check_branch
      %18 = sbr.rel (0) target = $region5
    $region4: #{fused_forward.1} parent=1 // pred_region
      %s20 = ssub.s32 128, 128
      %21 = vsyncadd [#allocation3], %s20
      %s23 = sshll.u32 [#allocation2], 4
      %s24 = int_to_ptr.vmem [resolvable:$true] %s23
      %26 = dma.hbm_to_vmem [thread:$0]  %s0, 128, %s24, [#allocation3]
    $region5: #{fused_forward.1} parent=1 // pred_fallthru
      _
    // Predicated region
    $region6: #{fused_forward.1} parent=1 // pred_check
      _
    $region7: #{fused_forward.1} parent=1 // pred_check_branch
      %28 = sbr.rel (0) target = $region9
    $region8: #{fused_forward.1} parent=1 // pred_region
      _
    $region9: #{fused_forward.1} parent=1 // pred_fallthru
      _
    // Predicated region
    $region10: #{fused_forward.1} parent=1 // pred_check
      _
    $region11: #{fused_forward.1} parent=1 // pred_check_branch
      %30 = sbr.rel (0) target = $region13
    $region12: #{fused_forward.1} parent=1 // pred_region
      _
    $region13: #{fused_forward.1} parent=1 // pred_fallthru
      _
    // Predicated region
    $region14: #{fused_forward.1} parent=1 // pred_check
      _
    $region15: #{fused_forward.1} parent=1 // pred_check_branch
      %32 = sbr.rel (0) target = $region17
    $region16: #{fused_forward.1} parent=1 // pred_region
      _
    $region17: #{fused_forward.1} parent=1 // pred_fallthru
      _
    // Predicated region
    $region18: #{fused_forward.1} parent=1 // pred_check
      _
    $region19: #{fused_forward.1} parent=1 // pred_check_branch
      %34 = sbr.rel (0) target = $region21
    $region20: #{fused_forward.1} parent=1 // pred_region
      _
    $region21: #{fused_forward.1} parent=1 // pred_fallthru
      _
    // Predicated region
    $region22: #{fused_forward.1} parent=1 // pred_check
      _
    $region23: #{fused_forward.1} parent=1 // pred_check_branch
      %36 = sbr.rel (0) target = $region25
    $region24: #{fused_forward.1} parent=1 // pred_region
      _
    $region25: #{fused_forward.1} parent=1 // pred_fallthru
      _
    // Predicated region
    $region26: #{fused_forward.1} parent=1 // pred_check
      _
    $region27: #{fused_forward.1} parent=1 // pred_check_branch
      %38 = sbr.rel (0) target = $region29
    $region28: #{fused_forward.1} parent=1 // pred_region
      %39 = dma.done [#allocation3], 128
    $region29: #{fused_forward.1} parent=1 // pred_fallthru
      _
    %v40 = vld [vmem:[#allocation2] sm:$0xff]
    %v41 = vld [vmem:[%s1] sm:$0xff]
    %v42 = vld [vmem:[%s2] sm:$0xff]
    %v43 = vld [vmem:[%s2 + $0x8] sm:$0xff]
    %v44 = vld [vmem:[%s3] sm:$0xf]
    %v45 = vld [vmem:[%s4] sm:$0x1]
    %v47 = vlaneseq
    %v48 = vshrl.u32 %v47, 7
    %v49 = vsub.s32 0, %v48
    %v50 = vrot.slane %v45, %v49
    %vm52 = vcmask 130048
    %v54 = vsel %vm52, %v40, 0
    %56 = vmatprep.subr.mxu0 0.0
    %57 = vmatpush1.msra.mxu0 %v42
    %58 = vmatprep.subr.mxu0 0.0
    %59 = vmatpush1.msra.mxu0 %v43
    %60 = vmatprep.subr.mxu0 0.0
    %61 = vmatpush1.msra.mxu0 0.0
    %62 = vmatprep.subr.mxu0 0.0
    %63 = vmatpush1.msra.mxu0 0.0
    %64 = vmatprep.subr.mxu0 0.0
    %65 = vmatpush1.msra.mxu0 0.0
    %66 = vmatprep.subr.mxu0 0.0
    %67 = vmatpush1.msra.mxu0 0.0
    %68 = vmatprep.subr.mxu0 0.0
    %69 = vmatpush1.msra.mxu0 0.0
    %70 = vmatprep.subr.mxu0 0.0
    %71 = vmatpush1.msra.mxu0 0.0
    %72 = vmatprep.subr.mxu0 0.0
    %73 = vmatpush1.msra.mxu0 0.0
    %74 = vmatprep.subr.mxu0 0.0
    %75 = vmatpush1.msra.mxu0 0.0
    %76 = vmatprep.subr.mxu0 0.0
    %77 = vmatpush1.msra.mxu0 0.0
    %78 = vmatprep.subr.mxu0 0.0
    %79 = vmatpush1.msra.mxu0 0.0
    %80 = vmatprep.subr.mxu0 0.0
    %81 = vmatpush1.msra.mxu0 0.0
    %82 = vmatprep.subr.mxu0 0.0
    %83 = vmatpush1.msra.mxu0 0.0
    %84 = vmatprep.subr.mxu0 0.0
    %85 = vmatpush1.msra.mxu0 0.0
    %86 = vmatprep.subr.mxu0 0.0
    %87 = vmatpush1.msra.mxu0 0.0
    %88 = vmatprep.subr.mxu0 0.0
    %89 = vmatpush1.msra.mxu0 0.0
    %90 = vmatprep.subr.mxu0 0.0
    %91 = vmatpush1.msra.mxu0 0.0
    %92 = vmatprep.subr.mxu0 0.0
    %93 = vmatpush1.msra.mxu0 0.0
    %94 = vmatprep.subr.mxu0 0.0
    %95 = vmatpush1.msra.mxu0 0.0
    %96 = vmatprep.subr.mxu0 0.0
    %97 = vmatpush1.msra.mxu0 0.0
    %98 = vmatprep.subr.mxu0 0.0
    %99 = vmatpush1.msra.mxu0 0.0
    %100 = vmatprep.subr.mxu0 0.0
    %101 = vmatpush1.msra.mxu0 0.0
    %102 = vmatprep.subr.mxu0 0.0
    %103 = vmatpush1.msra.mxu0 0.0
    %104 = vmatprep.subr.mxu0 0.0
    %105 = vmatpush1.msra.mxu0 0.0
    %106 = vmatprep.subr.mxu0 0.0
    %107 = vmatpush1.msra.mxu0 0.0
    %108 = vmatprep.subr.mxu0 0.0
    %109 = vmatpush1.msra.mxu0 0.0
    %110 = vmatprep.subr.mxu0 0.0
    %111 = vmatpush1.msra.mxu0 0.0
    %112 = vmatprep.subr.mxu0 0.0
    %113 = vmatpush1.msra.mxu0 0.0
    %114 = vmatprep.subr.mxu0 0.0
    %115 = vmatpush1.msra.mxu0 0.0
    %116 = vmatprep.subr.mxu0 0.0
    %117 = vmatpush1.msra.mxu0 0.0
    %118 = vmatprep.subr.mxu0 0.0
    %119 = vmatpush1.msra.mxu0 0.0
    %120 = vmatprep.mubr.f32.mxu0 0.0
    %121 = vmatmul.mubr.f32.gmra.mrb[0].mxu0 %v54
    %v122 = vpop.f32.mrb[0].mxu0
    %v123 = vadd.f32 %v50, %v122
    %v124 = vpop.f32.mrb[0].mxu0
    %125 = vdwg.mxu0
    %v126 = vmax.f32 %v123, 0.0
    %v127 = vld [vmem:[%s5] sm:$0x1]
    %v129 = vlaneseq
    %v130 = vshrl.u32 %v129, 7
    %v131 = vsub.s32 0, %v130
    %v132 = vrot.slane %v127, %v131
    %vm134 = vcmask 31744
    %v136 = vsel %vm134, %v41, 0
    %vm138 = vcmask 1043456
    %v140 = vsel %vm138, %v44, 0
    %142 = vmatprep.subr.mxu0 0.0
    %143 = vmatpush1.msra.mxu0 %v140
    %144 = vmatprep.subr.mxu0 0.0
    %145 = vmatpush1.msra.mxu0 0.0
    %146 = vmatprep.subr.mxu0 0.0
    %147 = vmatpush1.msra.mxu0 0.0
    %148 = vmatprep.subr.mxu0 0.0
    %149 = vmatpush1.msra.mxu0 0.0
    %150 = vmatprep.subr.mxu0 0.0
    %151 = vmatpush1.msra.mxu0 0.0
    %152 = vmatprep.subr.mxu0 0.0
    %153 = vmatpush1.msra.mxu0 0.0
    %154 = vmatprep.subr.mxu0 0.0
    %155 = vmatpush1.msra.mxu0 0.0
    %156 = vmatprep.subr.mxu0 0.0
    %157 = vmatpush1.msra.mxu0 0.0
    %158 = vmatprep.subr.mxu0 0.0
    %159 = vmatpush1.msra.mxu0 0.0
    %160 = vmatprep.subr.mxu0 0.0
    %161 = vmatpush1.msra.mxu0 0.0
    %162 = vmatprep.subr.mxu0 0.0
    %163 = vmatpush1.msra.mxu0 0.0
    %164 = vmatprep.subr.mxu0 0.0
    %165 = vmatpush1.msra.mxu0 0.0
    %166 = vmatprep.subr.mxu0 0.0
    %167 = vmatpush1.msra.mxu0 0.0
    %168 = vmatprep.subr.mxu0 0.0
    %169 = vmatpush1.msra.mxu0 0.0
    %170 = vmatprep.subr.mxu0 0.0
    %171 = vmatpush1.msra.mxu0 0.0
    %172 = vmatprep.subr.mxu0 0.0
    %173 = vmatpush1.msra.mxu0 0.0
    %174 = vmatprep.subr.mxu0 0.0
    %175 = vmatpush1.msra.mxu0 0.0
    %176 = vmatprep.subr.mxu0 0.0
    %177 = vmatpush1.msra.mxu0 0.0
    %178 = vmatprep.subr.mxu0 0.0
    %179 = vmatpush1.msra.mxu0 0.0
    %180 = vmatprep.subr.mxu0 0.0
    %181 = vmatpush1.msra.mxu0 0.0
    %182 = vmatprep.subr.mxu0 0.0
    %183 = vmatpush1.msra.mxu0 0.0
    %184 = vmatprep.subr.mxu0 0.0
    %185 = vmatpush1.msra.mxu0 0.0
    %186 = vmatprep.subr.mxu0 0.0
    %187 = vmatpush1.msra.mxu0 0.0
    %188 = vmatprep.subr.mxu0 0.0
    %189 = vmatpush1.msra.mxu0 0.0
    %190 = vmatprep.subr.mxu0 0.0
    %191 = vmatpush1.msra.mxu0 0.0
    %192 = vmatprep.subr.mxu0 0.0
    %193 = vmatpush1.msra.mxu0 0.0
    %194 = vmatprep.subr.mxu0 0.0
    %195 = vmatpush1.msra.mxu0 0.0
    %196 = vmatprep.subr.mxu0 0.0
    %197 = vmatpush1.msra.mxu0 0.0
    %198 = vmatprep.subr.mxu0 0.0
    %199 = vmatpush1.msra.mxu0 0.0
    %200 = vmatprep.subr.mxu0 0.0
    %201 = vmatpush1.msra.mxu0 0.0
    %202 = vmatprep.subr.mxu0 0.0
    %203 = vmatpush1.msra.mxu0 0.0
    %204 = vmatprep.subr.mxu0 0.0
    %205 = vmatpush1.msra.mxu0 0.0
    %206 = vmatprep.mubr.f32.mxu0 0.0
    %207 = vmatmul.mubr.f32.gmra.mrb[0].mxu0 %v136
    %v208 = vpop.f32.mrb[0].mxu0
    %v209 = vadd.f32 %v132, %v208
    %v210 = vpop.f32.mrb[0].mxu0
    %211 = vdwg.mxu0
    %v212 = vmax.f32 %v209, 0.0
    %vm213 = vcmask 261120
    %214 = vst.msk [vmem:[#allocation5] sm:$0xff] %vm213, %v126
    %215 = vst.msk [vmem:[#allocation6] sm:$0xff] %vm213, %v212
    %v216 = vmul.f32 %v126, %v212
    %v218 = vsel %vm213, 1.0, 0
    %v221 = vsel %vm213, %v216, 0
    %223 = vmatprep.subr.mxu0 0.0
    %224 = vmatpush1.xpose.msra.mxu0 %v221
    %225 = vmatprep.subr.mxu0 0.0
    %226 = vmatpush1.xpose.msra.mxu0 0.0
    %227 = vmatprep.subr.mxu0 0.0
    %228 = vmatpush1.xpose.msra.mxu0 0.0
    %229 = vmatprep.subr.mxu0 0.0
    %230 = vmatpush1.xpose.msra.mxu0 0.0
    %231 = vmatprep.subr.mxu0 0.0
    %232 = vmatpush1.xpose.msra.mxu0 0.0
    %233 = vmatprep.subr.mxu0 0.0
    %234 = vmatpush1.xpose.msra.mxu0 0.0
    %235 = vmatprep.subr.mxu0 0.0
    %236 = vmatpush1.xpose.msra.mxu0 0.0
    %237 = vmatprep.subr.mxu0 0.0
    %238 = vmatpush1.xpose.msra.mxu0 0.0
    %239 = vmatprep.subr.mxu0 0.0
    %240 = vmatpush1.xpose.msra.mxu0 0.0
    %241 = vmatprep.subr.mxu0 0.0
    %242 = vmatpush1.xpose.msra.mxu0 0.0
    %243 = vmatprep.subr.mxu0 0.0
    %244 = vmatpush1.xpose.msra.mxu0 0.0
    %245 = vmatprep.subr.mxu0 0.0
    %246 = vmatpush1.xpose.msra.mxu0 0.0
    %247 = vmatprep.subr.mxu0 0.0
    %248 = vmatpush1.xpose.msra.mxu0 0.0
    %249 = vmatprep.subr.mxu0 0.0
    %250 = vmatpush1.xpose.msra.mxu0 0.0
    %251 = vmatprep.subr.mxu0 0.0
    %252 = vmatpush1.xpose.msra.mxu0 0.0
    %253 = vmatprep.subr.mxu0 0.0
    %254 = vmatpush1.xpose.msra.mxu0 0.0
    %255 = vmatprep.subr.mxu0 0.0
    %256 = vmatpush1.xpose.msra.mxu0 0.0
    %257 = vmatprep.subr.mxu0 0.0
    %258 = vmatpush1.xpose.msra.mxu0 0.0
    %259 = vmatprep.subr.mxu0 0.0
    %260 = vmatpush1.xpose.msra.mxu0 0.0
    %261 = vmatprep.subr.mxu0 0.0
    %262 = vmatpush1.xpose.msra.mxu0 0.0
    %263 = vmatprep.subr.mxu0 0.0
    %264 = vmatpush1.xpose.msra.mxu0 0.0
    %265 = vmatprep.subr.mxu0 0.0
    %266 = vmatpush1.xpose.msra.mxu0 0.0
    %267 = vmatprep.subr.mxu0 0.0
    %268 = vmatpush1.xpose.msra.mxu0 0.0
    %269 = vmatprep.subr.mxu0 0.0
    %270 = vmatpush1.xpose.msra.mxu0 0.0
    %271 = vmatprep.subr.mxu0 0.0
    %272 = vmatpush1.xpose.msra.mxu0 0.0
    %273 = vmatprep.subr.mxu0 0.0
    %274 = vmatpush1.xpose.msra.mxu0 0.0
    %275 = vmatprep.subr.mxu0 0.0
    %276 = vmatpush1.xpose.msra.mxu0 0.0
    %277 = vmatprep.subr.mxu0 0.0
    %278 = vmatpush1.xpose.msra.mxu0 0.0
    %279 = vmatprep.subr.mxu0 0.0
    %280 = vmatpush1.xpose.msra.mxu0 0.0
    %281 = vmatprep.subr.mxu0 0.0
    %282 = vmatpush1.xpose.msra.mxu0 0.0
    %283 = vmatprep.subr.mxu0 0.0
    %284 = vmatpush1.xpose.msra.mxu0 0.0
    %285 = vmatprep.subr.mxu0 0.0
    %286 = vmatpush1.xpose.msra.mxu0 0.0
    %287 = vmatprep.mubr.f32.mxu0 0.0
    %288 = vmatmul.mubr.f32.gmra.mrb[0].mxu0 %v218
    %v289 = vpop.f32.mrb[0].mxu0
    %v290 = vadd.f32 0.0, %v289
    %v291 = vpop.f32.mrb[0].mxu0
    %292 = vdwg.mxu0
    %vm293 = vcmask 64512
    %294 = vst.msk [vmem:[%s8] sm:$0xff] %vm293, %v290
    // Predicated region
    $region30: #{fused_forward.1} parent=1 // pred_check
      _
    $region31: #{fused_forward.1} parent=1 // pred_check_branch
      %296 = sbr.rel (0) target = $region33
    $region32: #{fused_forward.1} parent=1 // pred_region
      %s298 = ssub.s32 128, 128
      %299 = vsyncadd [#allocation4], %s298
      %s301 = sshll.u32 [#allocation5], 4
      %s302 = int_to_ptr.vmem [resolvable:$true] %s301
      %304 = dma.vmem_to_hbm [thread:$0]  %s302, 128, %s6, [#allocation4]
    $region33: #{fused_forward.1} parent=1 // pred_fallthru
      _
    // Predicated region
    $region34: #{fused_forward.1} parent=1 // pred_check
      _
    $region35: #{fused_forward.1} parent=1 // pred_check_branch
      %306 = sbr.rel (0) target = $region37
    $region36: #{fused_forward.1} parent=1 // pred_region
      %s308 = ssub.s32 128, 128
      %309 = vsyncadd [#allocation7], %s308
      %s311 = sshll.u32 [#allocation6], 4
      %s312 = int_to_ptr.vmem [resolvable:$true] %s311
      %314 = dma.vmem_to_hbm [thread:$0]  %s312, 128, %s7, [#allocation7]
    $region37: #{fused_forward.1} parent=1 // pred_fallthru
      _
    // Predicated region
    $region38: #{fused_forward.1} parent=1 // pred_check
      _
    $region39: #{fused_forward.1} parent=1 // pred_check_branch
      %316 = sbr.rel (0) target = $region41
    $region40: #{fused_forward.1} parent=1 // pred_region
      _
    $region41: #{fused_forward.1} parent=1 // pred_fallthru
      _
    // Predicated region
    $region42: #{fused_forward.1} parent=1 // pred_check
      _
    $region43: #{fused_forward.1} parent=1 // pred_check_branch
      %318 = sbr.rel (0) target = $region45
    $region44: #{fused_forward.1} parent=1 // pred_region
      %319 = dma.done [#allocation4], 128
    $region45: #{fused_forward.1} parent=1 // pred_fallthru
      _
    // Predicated region
    $region46: #{fused_forward.1} parent=1 // pred_check
      _
    $region47: #{fused_forward.1} parent=1 // pred_check_branch
      %321 = sbr.rel (0) target = $region49
    $region48: #{fused_forward.1} parent=1 // pred_region
      %322 = dma.done [#allocation7], 128
    $region49: #{fused_forward.1} parent=1 // pred_fallthru
      _
    // Predicated region
    $region50: #{fused_forward.1} parent=1 // pred_check
      _
    $region51: #{fused_forward.1} parent=1 // pred_check_branch
      %324 = sbr.rel (0) target = $region53
    $region52: #{fused_forward.1} parent=1 // pred_region
      _
    $region53: #{fused_forward.1} parent=1 // pred_fallthru
      _
    %325 = vsyncpa [#allocation3], 1
    %326 = vsyncpa [#allocation4], 1
    %327 = vsyncpa [#allocation7], 1

</llo_original>
